<compile_context>
chip_gen: v5e
topology: v5e:2x2
jax: 0.10.0
libtpu: 0.0.40
codegen_flags: <defaults>
</compile_context>

<pallas_src>
import jax
import jax.numpy as jnp
from jax.experimental import pallas as pl
from jax.experimental.pallas import tpu as pltpu


def _round_up(x, m):
    return ((x + m - 1) // m) * m


def _choose_dst_tile(n_dst, tile_dst):
    """Pick a dst tile: multiple of 32 (int8 sublane), and keep >=2 dst tiles
    per dst type so the parallel grid axis can shard across v7x's 2 TCs."""
    td = _round_up(min(tile_dst, n_dst), 32)
    if n_dst > 32 and _round_up(n_dst, td) // td < 2:
        td = _round_up((n_dst + 1) // 2, 32)
    return td


def _rgcn_kernel(si_ref, nk_ref, a_ref, x_ref, w_ref, bsum_ref, out_ref,
                 ax_ref):
    """Grid = (dst tile i [parallel], relation r [arbitrary], src tile k [arbitrary]).

    si_ref   : (R,) int32 SMEM          per-relation source-type index (scalar prefetch)
    nk_ref   : (R,) int32 SMEM          per-relation number of valid src tiles (scalar prefetch)
    a_ref    : (1, tile_dst, tile_src)  int8  adjacency tile of relation r
    x_ref    : (1, tile_src, F_in+1)    bf16  source features + trailing ones column
    w_ref    : (1, F_in+1, F_out_pad)   f32   GraphConv weight (last row zero)
    bsum_ref : (1, F_out_pad)           f32   sum of biases over relations of this dst type
    out_ref  : (tile_dst, F_out_pad)    f32   output tile (resident accumulator over r, k)
    ax_ref   : (tile_dst, F_in+1)       f32   scratch: running A_r @ [X | 1] over src tiles
    """
    r = pl.program_id(1)
    k = pl.program_id(2)
    last_r = pl.num_programs(1) - 1
    last_k = pl.num_programs(2) - 1

    @pl.when(jnp.logical_and(r == 0, k == 0))
    def _():
        out_ref[...] = jnp.zeros_like(out_ref)

    @pl.when(k == 0)
    def _():
        ax_ref[...] = jnp.zeros_like(ax_ref)

    # Skip src tiles beyond this relation's actual source-type extent (the
    # index_map clamps the block index, so the DMA was skipped too).
    @pl.when(k < nk_ref[r])
    def _():
        a = a_ref[0].astype(jnp.bfloat16)           # int8 0/1 -> bf16 (exact)
        # Dominant MXU product, accumulated over src tiles: A @ [X | 1].
        # The ones column makes the last ax column the in-degree for free.
        ax_ref[...] += jnp.dot(a, x_ref[0], preferred_element_type=jnp.float32)

    @pl.when(k == last_k)
    def _():
        # Small epilogue matmul once per (dst tile, relation): (A@X) @ W_r,
        # then right-normalize.  W's last row is zero, so the ones column does
        # not contribute to the message.
        ax = ax_ref[...]
        msg = jnp.dot(ax, w_ref[0], preferred_element_type=jnp.float32)
        deg = ax[:, -1:]                             # in-degree (exact f32 count)
        dinv = 1.0 / jnp.maximum(deg, 1.0)           # norm='right', clamp(min=1)
        out_ref[...] += msg * dinv

    @pl.when(jnp.logical_and(r == last_r, k == last_k))
    def _():
        out_ref[...] = jnp.maximum(out_ref[...] + bsum_ref[...], 0.0)


def _rgcn_dst_type(src_idx, num_k, A_s, X_all, W_s, b_sum, *,
                   tile_dst, tile_src, grid_k):
    """Fused per-destination-node-type RGCN: sum over R relations + ReLU.

    src_idx : (R,)  int32               per-relation index into X_all's leading axis
    num_k   : (R,)  int32               per-relation number of valid src tiles
    A_s     : (R, N_dst_pad, K*ts)      int8
    X_all   : (S, N_src_pad, F_in+1)    bf16  (one slab per source node type)
    W_s     : (R, F_in+1, F_out_pad)    f32
    b_sum   : (1, F_out_pad)            f32
    returns (N_dst_pad, F_out_pad) f32
    """
    R, n_dst_pad, _ = A_s.shape
    f_in_aug = X_all.shape[-1]
    f_out_pad = W_s.shape[-1]
    grid = (n_dst_pad // tile_dst, R, grid_k)

    # Rough double-buffered VMEM footprint (int8 A dominates).  At the default
    # 512x2048 tiles this is ~4 MiB -> large headroom on v5e/v6e (128 MiB) and
    # v7x (64 MiB physical); the explicit limit matters on v5e (16 MiB default).
    lane = 128
    vmem_est = (2 * tile_dst * tile_src                          # int8 A
                + 2 * tile_src * _round_up(f_in_aug, lane) * 2   # bf16 X
                + 2 * tile_dst * f_out_pad * 4                   # resident f32 out
                + tile_dst * _round_up(f_in_aug, lane) * 4       # ax scratch
                + 2 * _round_up(f_in_aug, 8) * f_out_pad * 4)    # f32 W
    vmem_limit = max(32 * 1024 * 1024, int(1.5 * vmem_est))

    return pl.pallas_call(
        _rgcn_kernel,
        out_shape=jax.ShapeDtypeStruct((n_dst_pad, f_out_pad), jnp.float32),
        grid_spec=pltpu.PrefetchScalarGridSpec(
            num_scalar_prefetch=2,
            grid=grid,
            in_specs=[
                # A-tile stream dominates HBM traffic (int8, ~1 MiB/step at
                # default tiles).  k is clamped to the last valid block of this
                # relation so all-zero padding tiles are never re-DMA'd.
                pl.BlockSpec(
                    (1, tile_dst, tile_src),
                    lambda i, r, k, si, nk: (r, i, jnp.minimum(k, nk[r] - 1))),
                # De-duplicated source features: block picked by the prefetched
                # per-relation source-type index; same k clamp.
                pl.BlockSpec(
                    (1, tile_src, f_in_aug),
                    lambda i, r, k, si, nk: (si[r], jnp.minimum(k, nk[r] - 1), 0)),
                pl.BlockSpec((1, f_in_aug, f_out_pad),
                             lambda i, r, k, si, nk: (r, 0, 0)),
                pl.BlockSpec((1, f_out_pad), lambda i, r, k, si, nk: (0, 0)),
            ],
            out_specs=pl.BlockSpec((tile_dst, f_out_pad),
                                   lambda i, r, k, si, nk: (i, 0)),
            scratch_shapes=[
                pltpu.VMEM((tile_dst, f_in_aug), jnp.float32),  # running A@[X|1]
            ],
        ),
        compiler_params=pltpu.CompilerParams(
            # dst tiles are independent -> shardable across v7x's 2 TensorCores;
            # relation and src-tile axes are reductions into the resident output.
            dimension_semantics=("parallel", "arbitrary", "arbitrary"),
            vmem_limit_bytes=vmem_limit,
        ),
    )(src_idx, num_k, A_s, X_all, W_s, b_sum)


def prepare_rgcn(rel_graph, params, *, tile_dst=512, tile_src=2048):
    """One-time host-side packing (hoisted out of the per-forward path).

    rel_graph : dict etype -> (src_type, dst_type, A[N_dst, N_src]) dense adjacency
    params    : dict etype -> (W[F_in, F_out], b[F_out])
    Returns a dict of packed per-dst-type tensors + global layout info.
    """
    # TODO(synk): DGL's sparse (CSR / edge-list) message passing is represented
    # here via dense per-relation adjacency; a true sparse gather would need a
    # manual-DMA kernel.
    n_nodes = {}
    for src_t, dst_t, A in rel_graph.values():
        n_nodes[src_t] = max(n_nodes.get(src_t, 0), A.shape[1])
        n_nodes[dst_t] = max(n_nodes.get(dst_t, 0), A.shape[0])

    src_types = sorted({s for (s, _, _) in rel_graph.values()})
    max_src = max(n_nodes[s] for s in src_types)

    any_W = params[next(iter(params))][0]
    f_in, f_out = any_W.shape
    f_in_aug = f_in + 1                       # +1: ones column carries the in-degree
    f_out_pad = _round_up(f_out, 128)         # lane-dense output stores

    ts = _round_up(min(tile_src, max_src), 128)
    n_src_pad = _round_up(max_src, ts)

    by_dst = {}
    for etype, (src_t, dst_t, A) in rel_graph.items():
        by_dst.setdefault(dst_t, []).append((etype, src_t, A))

    per_dst = {}
    for dst_t, rels in by_dst.items():
        n_dst = n_nodes[dst_t]
        td = _choose_dst_tile(n_dst, tile_dst)
        n_dst_pad = _round_up(n_dst, td)

        nk = [max(1, -(-n_nodes[s] // ts)) for (_, s, _) in rels]
        grid_k = max(nk)
        src_dim = grid_k * ts

        A_list, W_list, idx_list = [], [], []
        b_acc = jnp.zeros((f_out,), jnp.float32)
        for etype, src_t, A in rels:
            W, b = params[etype]
            A_list.append(jnp.pad(A, ((0, n_dst_pad - A.shape[0]),
                                      (0, src_dim - A.shape[1]))))
            # Extra zero row so (A @ [X|1]) @ W_aug ignores the ones column.
            W_aug = jnp.concatenate(
                [W.astype(jnp.float32), jnp.zeros((1, f_out), jnp.float32)], axis=0)
            W_list.append(jnp.pad(W_aug, ((0, 0), (0, f_out_pad - f_out))))
            b_acc = b_acc + b.astype(jnp.float32)           # biases pre-summed
            idx_list.append(src_types.index(src_t))

        per_dst[dst_t] = dict(
            A_s=jnp.stack(A_list).astype(jnp.int8),         # 0/1 -> int8: half the A bytes
            W_s=jnp.stack(W_list),                           # (R, F_in+1, F_out_pad)
            b_sum=jnp.pad(b_acc, (0, f_out_pad - f_out)).reshape(1, f_out_pad),
            src_idx=jnp.asarray(idx_list, jnp.int32),
            num_k=jnp.asarray(nk, jnp.int32),
            n_dst=n_dst, td=td, grid_k=grid_k,
        )

    return dict(per_dst=per_dst, src_types=src_types, n_nodes=n_nodes,
                f_in=f_in, f_out=f_out, f_out_pad=f_out_pad,
                ts=ts, n_src_pad=n_src_pad)


def rgcn_layer_forward(prepared, feature):
    """Hetero RGCN layer forward (HeteroGraphConv(sum) + ReLU).

    prepared : output of prepare_rgcn()
    feature  : dict ntype -> [N, F_in]
    returns  : dict dst_type -> [N_dst, F_out]  (ReLU'd)
    """
    p = prepared
    n_src_pad = p["n_src_pad"]

    # Shared source-feature slabs, built ONCE per forward and reused by every
    # destination node type.  bf16, with a trailing ones column so the
    # in-degree falls out of the A@X matmul inside the kernel.
    slabs = []
    for s in p["src_types"]:
        x = feature[s].astype(jnp.float32)
        x_aug = jnp.concatenate([x, jnp.ones((x.shape[0], 1), jnp.float32)], axis=1)
        slabs.append(jnp.pad(x_aug, ((0, n_src_pad - x.shape[0]), (0, 0))))
    X_all = jnp.stack(slabs).astype(jnp.bfloat16)            # (S, n_src_pad, F_in+1)

    out = {}
    for dst_t, d in p["per_dst"].items():
        res = _rgcn_dst_type(d["src_idx"], d["num_k"], d["A_s"], X_all,
                             d["W_s"], d["b_sum"],
                             tile_dst=d["td"], tile_src=p["ts"],
                             grid_k=d["grid_k"])
        out[dst_t] = res[:d["n_dst"], :p["f_out"]]
    return out


def rgcn_layer_reference(rel_graph, feature, params):
    """Plain-JAX f32 reference mirroring the DGL module."""
    acc = {}
    for etype, (src_t, dst_t, A) in rel_graph.items():
        W, b = params[etype]
        deg = jnp.sum(A, axis=1, keepdims=True)
        dinv = 1.0 / jnp.maximum(deg, 1.0)
        msg = (A @ feature[src_t]) @ W
        h = msg * dinv + b[None, :]
        acc[dst_t] = acc.get(dst_t, 0.0) + h
    return {k: jnp.maximum(v, 0.0) for k, v in acc.items()}


if __name__ == "__main__":
    key = jax.random.PRNGKey(0)

    in_feats, out_feats = 16, 32
    # Small, but large enough to exercise multi-tile dst (parallel) and src
    # (reduction) grid axes, ragged node-count padding, and the per-relation
    # src-tile skip path ('bought-by' has the smaller source type).
    n_user, n_item = 160, 96

    k_a1, k_a2, k_a3, k_xu, k_xi, k_w, k_b = jax.random.split(key, 7)
    A_follows = (jax.random.uniform(k_a1, (n_user, n_user)) > 0.8).astype(jnp.float32)
    A_buys = (jax.random.uniform(k_a2, (n_item, n_user)) > 0.8).astype(jnp.float32)
    A_boughtby = (jax.random.uniform(k_a3, (n_user, n_item)) > 0.8).astype(jnp.float32)
    # heterogeneous graph: etype -> (src_type, dst_type, dense adjacency [N_dst, N_src])
    rel_graph = {
        "follows": ("user", "user", A_follows),
        "buys": ("user", "item", A_buys),
        "bought-by": ("item", "user", A_boughtby),
    }

    feature = {
        "user": jax.random.normal(k_xu, (n_user, in_feats), jnp.float32),
        "item": jax.random.normal(k_xi, (n_item, in_feats), jnp.float32),
    }

    # per-relation GraphConv parameters (W: [F_in, F_out], b: [F_out])
    params = {}
    wkeys = jax.random.split(k_w, len(rel_graph))
    bkeys = jax.random.split(k_b, len(rel_graph))
    for i, etype in enumerate(sorted(rel_graph.keys())):
        W = jax.random.normal(wkeys[i], (in_feats, out_feats), jnp.float32) * 0.1
        b = jax.random.normal(bkeys[i], (out_feats,), jnp.float32) * 0.01
        params[etype] = (W, b)

    ref = rgcn_layer_reference(rel_graph, feature, params)

    # 1) Small tiles: multi-tile grid on every axis + tile-skip path.
    prep_small = prepare_rgcn(rel_graph, params, tile_dst=64, tile_src=128)
    out_small = rgcn_layer_forward(prep_small, feature)

    # 2) Production defaults (tiles clamp to this small graph automatically).
    prep_default = prepare_rgcn(rel_graph, params)
    out_default = rgcn_layer_forward(prep_default, feature)

    for out in (out_small, out_default):
        out = {k: jax.block_until_ready(v) for k, v in out.items()}
        assert out["user"].shape == ref["user"].shape == (n_user, out_feats)
        assert out["item"].shape == ref["item"].shape == (n_item, out_feats)
        for k in out:
            # A is 0/1 (exact in int8/bf16); X in bf16 gives ~0.4% rel error vs f32 ref.
            assert jnp.allclose(out[k], ref[k], atol=2e-2, rtol=2e-2), k

    print("KERNEL_OK")
</pallas_src>

<mosaic_0001>
module attributes {stable_mosaic.version = 11 : i64} {
  func.func @_rgcn_kernel(%arg0: i32, %arg1: i32, %arg2: i32, %arg3: memref<2xi32, #tpu.memory_space<smem>>, %arg4: memref<2xi32, #tpu.memory_space<smem>>, %arg5: memref<1x64x128xi8, #tpu.memory_space<vmem>>, %arg6: memref<1x128x17xbf16, #tpu.memory_space<vmem>>, %arg7: memref<1x17x128xf32, #tpu.memory_space<vmem>>, %arg8: memref<1x128xf32, #tpu.memory_space<vmem>>, %arg9: memref<64x128xf32, #tpu.memory_space<vmem>>, %arg10: memref<64x17xf32, #tpu.memory_space<vmem>>) attributes {dimension_semantics = [#tpu.dimension_semantics<parallel>, #tpu.dimension_semantics<arbitrary>, #tpu.dimension_semantics<arbitrary>], iteration_bounds = array<i64: 3, 2, 2>, scalar_prefetch = 2 : i64, scratch_operands = 1 : i64, tpu.core_type = #tpu.core_type<tc>, window_params = [{transform_indices = @transform_0, window_bounds = array<i64: 1, 64, 128>}, {transform_indices = @transform_1, window_bounds = array<i64: 1, 128, 17>}, {transform_indices = @transform_2, window_bounds = array<i64: 1, 17, 128>}, {pipeline_mode = #tpu.pipeline_mode<synchronous>, transform_indices = @transform_3, window_bounds = array<i64: 1, 128>}, {transform_indices = @transform_4, window_bounds = array<i64: 64, 128>}]} {
    %c0_i32 = arith.constant 0 : i32
    %0 = arith.cmpi eq, %arg1, %c0_i32 : i32
    %c0_i32_0 = arith.constant 0 : i32
    %1 = arith.cmpi eq, %arg2, %c0_i32_0 : i32
    %2 = arith.andi %0, %1 : i1
    %3 = arith.extui %2 : i1 to i32
    %c0_i32_1 = arith.constant 0 : i32
    %4 = arith.cmpi ne, %3, %c0_i32_1 : i32
    scf.if %4 {
      %cst = arith.constant 0.000000e+00 : f32
      %21 = vector.broadcast %cst : f32 to vector<64x128xf32>
      %c0 = arith.constant 0 : index
      %c0_9 = arith.constant 0 : index
      %22 = vector.load %arg9[%c0, %c0_9] : memref<64x128xf32, #tpu.memory_space<vmem>>, vector<64x128xf32>
      tpu.vector_store %arg9[%c0, %c0_9], %21 {strides = array<i32>} : memref<64x128xf32, #tpu.memory_space<vmem>>, vector<64x128xf32>,
    } else {
    }
    %c0_i32_2 = arith.constant 0 : i32
    %5 = arith.cmpi eq, %arg2, %c0_i32_2 : i32
    %6 = arith.extui %5 : i1 to i32
    %c0_i32_3 = arith.constant 0 : i32
    %7 = arith.cmpi ne, %6, %c0_i32_3 : i32
    scf.if %7 {
      %cst = arith.constant 0.000000e+00 : f32
      %21 = vector.broadcast %cst : f32 to vector<64x17xf32>
      %c0 = arith.constant 0 : index
      %c0_9 = arith.constant 0 : index
      %22 = vector.load %arg10[%c0, %c0_9] : memref<64x17xf32, #tpu.memory_space<vmem>>, vector<64x17xf32>
      tpu.vector_store %arg10[%c0, %c0_9], %21 {strides = array<i32>} : memref<64x17xf32, #tpu.memory_space<vmem>>, vector<64x17xf32>,
    } else {
    }
    %8 = arith.index_cast %arg1 : i32 to index
    %9 = memref.load %arg4[%8] : memref<2xi32, #tpu.memory_space<smem>>
    %10 = arith.cmpi slt, %arg2, %9 : i32
    %11 = arith.extui %10 : i1 to i32
    %c0_i32_4 = arith.constant 0 : i32
    %12 = arith.cmpi ne, %11, %c0_i32_4 : i32
    scf.if %12 {
      %c0 = arith.constant 0 : index
      %c0_9 = arith.constant 0 : index
      %c0_10 = arith.constant 0 : index
      %21 = vector.load %arg5[%c0, %c0_9, %c0_10] : memref<1x64x128xi8, #tpu.memory_space<vmem>>, vector<1x64x128xi8>
      %22 = vector.shape_cast %21 : vector<1x64x128xi8> to vector<64x128xi8>
      %23 = arith.sitofp %22 : vector<64x128xi8> to vector<64x128xbf16>
      %c0_11 = arith.constant 0 : index
      %c0_12 = arith.constant 0 : index
      %24 = vector.load %arg10[%c0_11, %c0_12] : memref<64x17xf32, #tpu.memory_space<vmem>>, vector<64x17xf32>
      %c0_13 = arith.constant 0 : index
      %c0_14 = arith.constant 0 : index
      %c0_15 = arith.constant 0 : index
      %25 = vector.load %arg6[%c0_13, %c0_14, %c0_15] : memref<1x128x17xbf16, #tpu.memory_space<vmem>>, vector<1x128x17xbf16>
      %26 = vector.shape_cast %25 : vector<1x128x17xbf16> to vector<128x17xbf16>
      %cst = arith.constant dense<0.000000e+00> : vector<64x17xf32>
      %27 = tpu.matmul %23, %26, %cst {dimension_numbers = #tpu.dot_dimension_numbers<[1], [0], [0], [1], [0, 0, 1, 1], [], []>} : vector<64x128xbf16>, vector<128x17xbf16>, vector<64x17xf32> -> vector<64x17xf32>
      %28 = arith.addf %24, %27 : vector<64x17xf32>
      %c0_16 = arith.constant 0 : index
      %c0_17 = arith.constant 0 : index
      %29 = vector.load %arg10[%c0_16, %c0_17] : memref<64x17xf32, #tpu.memory_space<vmem>>, vector<64x17xf32>
      tpu.vector_store %arg10[%c0_16, %c0_17], %28 {strides = array<i32>} : memref<64x17xf32, #tpu.memory_space<vmem>>, vector<64x17xf32>,
    } else {
    }
    %c1_i32 = arith.constant 1 : i32
    %13 = arith.cmpi eq, %arg2, %c1_i32 : i32
    %14 = arith.extui %13 : i1 to i32
    %c0_i32_5 = arith.constant 0 : i32
    %15 = arith.cmpi ne, %14, %c0_i32_5 : i32
    scf.if %15 {
      %c0 = arith.constant 0 : index
      %c0_9 = arith.constant 0 : index
      %21 = vector.load %arg10[%c0, %c0_9] : memref<64x17xf32, #tpu.memory_space<vmem>>, vector<64x17xf32>
      %c0_10 = arith.constant 0 : index
      %c0_11 = arith.constant 0 : index
      %c0_12 = arith.constant 0 : index
      %22 = vector.load %arg7[%c0_10, %c0_11, %c0_12] : memref<1x17x128xf32, #tpu.memory_space<vmem>>, vector<1x17x128xf32>
      %23 = vector.shape_cast %22 : vector<1x17x128xf32> to vector<17x128xf32>
      %cst = arith.constant dense<0.000000e+00> : vector<64x128xf32>
      %24 = tpu.matmul %21, %23, %cst {dimension_numbers = #tpu.dot_dimension_numbers<[1], [0], [0], [1], [0, 0, 1, 1], [], []>} : vector<64x17xf32>, vector<17x128xf32>, vector<64x128xf32> -> vector<64x128xf32>
      %25 = vector.extract_strided_slice %21 {offsets = [0, 16], sizes = [64, 1], strides = [1, 1]} : vector<64x17xf32> to vector<64x1xf32>
      %cst_13 = arith.constant 1.000000e+00 : f32
      %26 = vector.broadcast %cst_13 : f32 to vector<64x1xf32>
      %27 = arith.maximumf %25, %26 : vector<64x1xf32>
      %cst_14 = arith.constant 1.000000e+00 : f32
      %28 = vector.broadcast %cst_14 : f32 to vector<64x1xf32>
      %29 = arith.divf %28, %27 : vector<64x1xf32>
      %c0_15 = arith.constant 0 : index
      %c0_16 = arith.constant 0 : index
      %30 = vector.load %arg9[%c0_15, %c0_16] : memref<64x128xf32, #tpu.memory_space<vmem>>, vector<64x128xf32>
      %31 = vector.broadcast %29 : vector<64x1xf32> to vector<64x128xf32>
      %32 = arith.mulf %24, %31 : vector<64x128xf32>
      %33 = arith.addf %30, %32 : vector<64x128xf32>
      %c0_17 = arith.constant 0 : index
      %c0_18 = arith.constant 0 : index
      %34 = vector.load %arg9[%c0_17, %c0_18] : memref<64x128xf32, #tpu.memory_space<vmem>>, vector<64x128xf32>
      tpu.vector_store %arg9[%c0_17, %c0_18], %33 {strides = array<i32>} : memref<64x128xf32, #tpu.memory_space<vmem>>, vector<64x128xf32>,
    } else {
    }
    %c1_i32_6 = arith.constant 1 : i32
    %16 = arith.cmpi eq, %arg1, %c1_i32_6 : i32
    %c1_i32_7 = arith.constant 1 : i32
    %17 = arith.cmpi eq, %arg2, %c1_i32_7 : i32
    %18 = arith.andi %16, %17 : i1
    %19 = arith.extui %18 : i1 to i32
    %c0_i32_8 = arith.constant 0 : i32
    %20 = arith.cmpi ne, %19, %c0_i32_8 : i32
    scf.if %20 {
      %c0 = arith.constant 0 : index
      %c0_9 = arith.constant 0 : index
      %21 = vector.load %arg9[%c0, %c0_9] : memref<64x128xf32, #tpu.memory_space<vmem>>, vector<64x128xf32>
      %c0_10 = arith.constant 0 : index
      %c0_11 = arith.constant 0 : index
      %22 = vector.load %arg8[%c0_10, %c0_11] : memref<1x128xf32, #tpu.memory_space<vmem>>, vector<1x128xf32>
      %23 = vector.broadcast %22 : vector<1x128xf32> to vector<64x128xf32>
      %24 = arith.addf %21, %23 : vector<64x128xf32>
      %cst = arith.constant 0.000000e+00 : f32
      %25 = vector.broadcast %cst : f32 to vector<64x128xf32>
      %26 = arith.maximumf %24, %25 : vector<64x128xf32>
      %c0_12 = arith.constant 0 : index
      %c0_13 = arith.constant 0 : index
      %27 = vector.load %arg9[%c0_12, %c0_13] : memref<64x128xf32, #tpu.memory_space<vmem>>, vector<64x128xf32>
      tpu.vector_store %arg9[%c0_12, %c0_13], %26 {strides = array<i32>} : memref<64x128xf32, #tpu.memory_space<vmem>>, vector<64x128xf32>,
    } else {
    }
    return
  }
  func.func @transform_0(%arg0: i32, %arg1: i32, %arg2: i32, %arg3: memref<2xi32, #tpu.memory_space<smem>>, %arg4: memref<2xi32, #tpu.memory_space<smem>>) -> (i32, i32, i32) {
    %0 = arith.index_cast %arg1 : i32 to index
    %1 = memref.load %arg4[%0] : memref<2xi32, #tpu.memory_space<smem>>
    %c1_i32 = arith.constant 1 : i32
    %2 = arith.subi %1, %c1_i32 : i32
    %3 = arith.minsi %arg2, %2 : i32
    %c0_i32 = arith.constant 0 : i32
    return %arg1, %arg0, %3 : i32, i32, i32
  }
  func.func @transform_1(%arg0: i32, %arg1: i32, %arg2: i32, %arg3: memref<2xi32, #tpu.memory_space<smem>>, %arg4: memref<2xi32, #tpu.memory_space<smem>>) -> (i32, i32, i32) {
    %0 = arith.index_cast %arg1 : i32 to index
    %1 = memref.load %arg3[%0] : memref<2xi32, #tpu.memory_space<smem>>
    %2 = arith.index_cast %arg1 : i32 to index
    %3 = memref.load %arg4[%2] : memref<2xi32, #tpu.memory_space<smem>>
    %c1_i32 = arith.constant 1 : i32
    %4 = arith.subi %3, %c1_i32 : i32
    %5 = arith.minsi %arg2, %4 : i32
    %c0_i32 = arith.constant 0 : i32
    %c0_i32_0 = arith.constant 0 : i32
    return %1, %5, %c0_i32 : i32, i32, i32
  }
  func.func @transform_2(%arg0: i32, %arg1: i32, %arg2: i32, %arg3: memref<2xi32, #tpu.memory_space<smem>>, %arg4: memref<2xi32, #tpu.memory_space<smem>>) -> (i32, i32, i32) {
    %c0_i32 = arith.constant 0 : i32
    %c0_i32_0 = arith.constant 0 : i32
    %c0_i32_1 = arith.constant 0 : i32
    return %arg1, %c0_i32, %c0_i32_0 : i32, i32, i32
  }
  func.func @transform_3(%arg0: i32, %arg1: i32, %arg2: i32, %arg3: memref<2xi32, #tpu.memory_space<smem>>, %arg4: memref<2xi32, #tpu.memory_space<smem>>) -> (i32, i32) {
    %c0_i32 = arith.constant 0 : i32
    %c0_i32_0 = arith.constant 0 : i32
    %c0_i32_1 = arith.constant 0 : i32
    return %c0_i32, %c0_i32_0 : i32, i32
  }
  func.func @transform_4(%arg0: i32, %arg1: i32, %arg2: i32, %arg3: memref<2xi32, #tpu.memory_space<smem>>, %arg4: memref<2xi32, #tpu.memory_space<smem>>) -> (i32, i32) {
    %c0_i32 = arith.constant 0 : i32
    %c0_i32_0 = arith.constant 0 : i32
    return %arg0, %c0_i32 : i32, i32
  }
}

</mosaic_0001>

<llo_original>
// kernel: tpu_custom_call.1
$region0: #{tpu_custom_call.1}
  #allocation0 [shape = 'u32[]', space=smem, size = 0x4, offset = 0x4, fixed_abs, tag = 'smem constant byte address 0x4 - core index']
  #allocation1 [shape = 'u32[72,128]{1,0:T(1,128)}', space=vmem, size = 0x9000, scoped, tag = 'internal scratch']
  #allocation2 [shape = 'f32[64,17]{1,0:T(8,128)}', space=vmem, size = 0x8000, scoped, tag = 'scratch operand']
  #allocation3 [shape = 's32[1]{0}', space=sflag, size = 0x4, scoped, tag = 'scoped memory for tpu_custom_call.1']
  #allocation4 [shape = 'u8[512]{0}', space=smem, size = 0x200, scoped, tag = 'prefetched SMEM operand 0']
  #allocation5 [shape = 'u8[512]{0}', space=smem, size = 0x200, scoped, tag = 'prefetched SMEM operand 1']
  %s0 = inlined_call_operand.vmem [shape: s32[2], index: 0, kind: input, shape index: {}]
  %s1 = inlined_call_operand.vmem [shape: s32[2], index: 1, kind: input, shape index: {}]
  %s2 = inlined_call_operand.vmem [shape: s8[2,192,256], index: 2, kind: input, shape index: {}]
  %s3 = inlined_call_operand.vmem [shape: bf16[2,256,17], index: 3, kind: input, shape index: {}]
  %s4 = inlined_call_operand.vmem [shape: f32[2,17,128], index: 4, kind: input, shape index: {}]
  %s5 = inlined_call_operand.vmem [shape: f32[1,128], index: 5, kind: input, shape index: {}]
  %s6 = inlined_call_operand.hbm [shape: f32[192,128], index: 6, kind: output, shape index: {}]
  %s7 = sld [smem:[#allocation0]]
  $region107: #{tpu_custom_call.1} parent=0
    _
  %s9 = ssub.s32 1, %s7
  %s10 = scalar_select 0, %s9, %s7
  %s12 = sshll.u32 %s0, 4
  %s13 = int_to_ptr.vmem [resolvable:$true] %s12
  %15 = dma.vmem_to_smem %s13, 16, [#allocation4], [#allocation3]
  %s17 = sshll.u32 %s1, 4
  %s18 = int_to_ptr.vmem [resolvable:$true] %s17
  %20 = dma.vmem_to_smem %s18, 16, [#allocation5], [#allocation3]
  %22 = dma.done [#allocation3], 32
  %23 = sfence
  $region1: #{tpu_custom_call.1} parent=0
    #allocation6 [shape = 'u8[16384]{0}', space=vmem, size = 0x4000, scoped, tag = 'input window, operand 2']
    #allocation7 [shape = 'u8[65536]{0}', space=vmem, size = 0x10000, scoped, tag = 'output window, operand 0']
    #allocation8 [shape = 's32[2]{0}', space=sflag, size = 0x8, scoped, tag = 'scoped memory for tpu_custom_call.1']
    %24 = vsyncpa [#allocation8], 0
    %s25 = scalar_lea.sflag [#allocation8], 1
    %26 = vsyncpa %s25, 0
    loop: start=0, step=1, limit=14
    $region2: #{tpu_custom_call.1} parent=1 // loop_pre_header
      _
    $region3: #{tpu_custom_call.1} parent=1 // loop_header
      %s28 = sphi 0, %s32
      %p29 = scmp.ge.s32.totalorder %s28, 14
      %s35 = sphi 0, %s54
      %s36 = sphi 0, %s50
      %s37 = sphi 0, %s46
      %s38 = sphi 0, %s35
      %s39 = sphi 0, %s36
      %s40 = sphi 0, %s37
      %s41 = sphi 0, %s38
      %s42 = sphi 0, %s39
      %s43 = sphi 0, %s40
      %s69 = sphi 0, %s71
      %s72 = sphi 0, %s69
      %s73 = sphi 0, %s72
      %s89 = sphi 0, %s73
      %s107 = sphi 0, %s109
      %s110 = sphi 0, %s107
      %s111 = sphi 0, %s110
      %s127 = sphi 0, %s111
      %s133 = sphi 0, %s135
      %s136 = sphi 0, %s133
      %s137 = sphi 0, %s136
      %s153 = sphi 0, %s137
      %s157 = sphi 0, %s157
      %s159 = sphi 0, %s157
      %s160 = sphi 0, %s159
      %s174 = sphi 0, %s160
      %s180 = sphi 0, %s182
      %s183 = sphi 0, %s180
      %s184 = sphi 0, %s183
      %s200 = sphi 0, %s184
    $region4: #{tpu_custom_call.1} parent=1 // loop_header_branch
      %31 = sbr.rel (%p29) target = $region8
    $region5: #{tpu_custom_call.1} parent=1 // loop_body
      %s33 = ssub.s32 %s28, 1
      %s34 = ssub.s32 %s28, 2
      %s44 = sadd.s32 1, %s37
      %p45 = scmp.ge.s32.totalorder %s44, 2
      %s46 = scalar_select %p45, 0, %s44
      %s47 = sadd.s32 1, %s36
      %s48 = scalar_select %p45, %s47, %s36
      %p49 = scmp.ge.s32.totalorder %s48, 2
      %s50 = scalar_select %p49, 0, %s48
      %s51 = sadd.s32 1, %s35
      %s52 = scalar_select %p49, %s51, %s35
      %p53 = scmp.ge.s32.totalorder %s52, 3
      %s54 = scalar_select %p53, 0, %s52
      %s55 = sld [smem:[#allocation5 + %s36]]
      %s56 = ssub.s32 %s55, 1
      %p57 = scmp.lt.s32.totalorder %s37, %s56
      %s58 = scalar_select %p57, %s37, %s56
      %s59 = sld [smem:[#allocation5 + %s50]]
      %s60 = ssub.s32 %s59, 1
      %p61 = scmp.lt.s32.totalorder %s46, %s60
      %s62 = scalar_select %p61, %s46, %s60
      %s63 = ssub.s32 %s36, %s50
      %s64 = ssub.s32 %s35, %s54
      %s65 = sor.u32 %s63, %s64
      %s66 = ssub.s32 %s58, %s62
      %s67 = sor.u32 %s65, %s66
      %p68 = scmp.eq.s32.totalorder %s67, 0
      %s70 = sadd.s32 %s69, 1
      %s71 = scalar_select %p68, %s69, %s70
      %p74 = pneg %p68
      %p75 = scmp.eq.s32.totalorder %s28, 11
      %p76 = por %p74, %p75
      %p77 = scmp.ne.s32.totalorder %s69, %s72
      %p78 = scmp.eq.s32.totalorder %s28, 0
      %p79 = por %p77, %p78
      %p80 = scmp.ne.s32.totalorder %s69, %s72
      %p81 = scmp.eq.s32.totalorder %s33, 11
      %p82 = por %p80, %p81
      %p83 = scmp.ne.s32.totalorder %s72, %s73
      %p84 = scmp.eq.s32.totalorder %s33, 0
      %p85 = por %p83, %p84
      %p86 = scmp.ne.s32.totalorder %s72, %s73
      %p87 = scmp.eq.s32.totalorder %s34, 11
      %p88 = por %p86, %p87
      %p90 = scmp.ne.s32.totalorder %s73, %s89
      %p91 = scmp.eq.s32.totalorder %s34, 0
      %p92 = por %p90, %p91
      %s93 = sld [smem:[#allocation4 + %s36]]
      %s94 = sld [smem:[#allocation5 + %s36]]
      %s95 = ssub.s32 %s94, 1
      %p96 = scmp.lt.s32.totalorder %s37, %s95
      %s97 = scalar_select %p96, %s37, %s95
      %s98 = sld [smem:[#allocation4 + %s50]]
      %s99 = sld [smem:[#allocation5 + %s50]]
      %s100 = ssub.s32 %s99, 1
      %p101 = scmp.lt.s32.totalorder %s46, %s100
      %s102 = scalar_select %p101, %s46, %s100
      %s103 = ssub.s32 %s93, %s98
      %s104 = ssub.s32 %s97, %s102
      %s105 = sor.u32 %s103, %s104
      %p106 = scmp.eq.s32.totalorder %s105, 0
      %s108 = sadd.s32 %s107, 1
      %s109 = scalar_select %p106, %s107, %s108
      %p112 = pneg %p106
      %p113 = scmp.eq.s32.totalorder %s28, 11
      %p114 = por %p112, %p113
      %p115 = scmp.ne.s32.totalorder %s107, %s110
      %p116 = scmp.eq.s32.totalorder %s28, 0
      %p117 = por %p115, %p116
      %p118 = scmp.ne.s32.totalorder %s107, %s110
      %p119 = scmp.eq.s32.totalorder %s33, 11
      %p120 = por %p118, %p119
      %p121 = scmp.ne.s32.totalorder %s110, %s111
      %p122 = scmp.eq.s32.totalorder %s33, 0
      %p123 = por %p121, %p122
      %p124 = scmp.ne.s32.totalorder %s110, %s111
      %p125 = scmp.eq.s32.totalorder %s34, 11
      %p126 = por %p124, %p125
      %p128 = scmp.ne.s32.totalorder %s111, %s127
      %p129 = scmp.eq.s32.totalorder %s34, 0
      %p130 = por %p128, %p129
      %s131 = ssub.s32 %s36, %s50
      %p132 = scmp.eq.s32.totalorder %s131, 0
      %s134 = sadd.s32 %s133, 1
      %s135 = scalar_select %p132, %s133, %s134
      %p138 = pneg %p132
      %p139 = scmp.eq.s32.totalorder %s28, 11
      %p140 = por %p138, %p139
      %p141 = scmp.ne.s32.totalorder %s133, %s136
      %p142 = scmp.eq.s32.totalorder %s28, 0
      %p143 = por %p141, %p142
      %p144 = scmp.ne.s32.totalorder %s133, %s136
      %p145 = scmp.eq.s32.totalorder %s33, 11
      %p146 = por %p144, %p145
      %p147 = scmp.ne.s32.totalorder %s136, %s137
      %p148 = scmp.eq.s32.totalorder %s33, 0
      %p149 = por %p147, %p148
      %p150 = scmp.ne.s32.totalorder %s136, %s137
      %p151 = scmp.eq.s32.totalorder %s34, 11
      %p152 = por %p150, %p151
      %p154 = scmp.ne.s32.totalorder %s137, %s153
      %p155 = scmp.eq.s32.totalorder %s34, 0
      %p156 = por %p154, %p155
      %s158 = sadd.s32 %s157, 1
      %p161 = scmp.eq.s32.totalorder %s28, 11
      %p162 = scmp.ne.s32.totalorder %s157, %s159
      %p163 = scmp.eq.s32.totalorder %s28, 0
      %p164 = por %p162, %p163
      %p165 = scmp.ne.s32.totalorder %s157, %s159
      %p166 = scmp.eq.s32.totalorder %s33, 11
      %p167 = por %p165, %p166
      %p168 = scmp.ne.s32.totalorder %s159, %s160
      %p169 = scmp.eq.s32.totalorder %s33, 0
      %p170 = por %p168, %p169
      %p171 = scmp.ne.s32.totalorder %s159, %s160
      %p172 = scmp.eq.s32.totalorder %s34, 11
      %p173 = por %p171, %p172
      %p175 = scmp.ne.s32.totalorder %s160, %s174
      %p176 = scmp.eq.s32.totalorder %s34, 0
      %p177 = por %p175, %p176
      %s178 = ssub.s32 %s35, %s54
      %p179 = scmp.eq.s32.totalorder %s178, 0
      %s181 = sadd.s32 %s180, 1
      %s182 = scalar_select %p179, %s180, %s181
      %p185 = pneg %p179
      %p186 = scmp.eq.s32.totalorder %s28, 11
      %p187 = por %p185, %p186
      %p188 = scmp.ne.s32.totalorder %s180, %s183
      %p189 = scmp.eq.s32.totalorder %s28, 0
      %p190 = por %p188, %p189
      %p191 = scmp.ne.s32.totalorder %s180, %s183
      %p192 = scmp.eq.s32.totalorder %s33, 11
      %p193 = por %p191, %p192
      %p194 = scmp.ne.s32.totalorder %s183, %s184
      %p195 = scmp.eq.s32.totalorder %s33, 0
      %p196 = por %p194, %p195
      %p197 = scmp.ne.s32.totalorder %s183, %s184
      %p198 = scmp.eq.s32.totalorder %s34, 11
      %p199 = por %p197, %p198
      %p201 = scmp.ne.s32.totalorder %s184, %s200
      %p202 = scmp.eq.s32.totalorder %s34, 0
      %p203 = por %p201, %p202
      %p204 = scmp.le.s32.totalorder 1, %s28
      %p205 = scmp.lt.s32.totalorder %s28, 13
      %p206 = pnand %p204, %p205
      %p207 = pneg %p206
      // Predicated region
      $region9: #{tpu_custom_call.1} parent=5 // pred_check
        _
      $region10: #{tpu_custom_call.1} parent=5 // pred_check_branch
        %209 = sbr.rel (%p206) target = $region12
      $region11: #{tpu_custom_call.1} parent=5 // pred_region
        %s210 = ssub.s32 %s28, 1
        // Predicated region
        $region13: #{tpu_custom_call.1} parent=11 // pred_check
          %p211 = pneg %p170
        $region14: #{tpu_custom_call.1} parent=11 // pred_check_branch
          %213 = sbr.rel (%p211) target = $region16
        $region15: #{tpu_custom_call.1} parent=11 // pred_region
          _
        $region16: #{tpu_custom_call.1} parent=11 // pred_fallthru
          _
      $region12: #{tpu_custom_call.1} parent=5 // pred_fallthru
        _
      %p214 = scmp.lt.s32.totalorder %s28, 12
      // Predicated region
      $region17: #{tpu_custom_call.1} parent=5 // pred_check
        %p215 = pneg %p214
      $region18: #{tpu_custom_call.1} parent=5 // pred_check_branch
        %217 = sbr.rel (%p215) target = $region20
      $region19: #{tpu_custom_call.1} parent=5 // pred_region
        // Predicated region
        $region21: #{tpu_custom_call.1} parent=19 // pred_check
          %p218 = pneg %p79
        $region22: #{tpu_custom_call.1} parent=19 // pred_check_branch
          %220 = sbr.rel (%p218) target = $region24
        $region23: #{tpu_custom_call.1} parent=19 // pred_region
          %s221 = sand.u32 %s69, 1
          %s222 = sand.u32 %s69, 1
          %s223 = smul.addr %s222, 16
          %s224 = scalar_lea.vmem [#allocation6], %s223
          %s225 = sld [smem:[#allocation5 + %s36]]
          %s226 = ssub.s32 %s225, 1
          %p227 = scmp.lt.s32.totalorder %s37, %s226
          %s228 = scalar_select %p227, %s37, %s226
          %s229 = smul.u32 2, %s35
          %s230 = smul.addr %s229, 2
          %s231 = sadd.s32 %s228, %s230
          %s232 = smul.addr %s36, 12
          %s233 = sadd.s32 %s231, %s232
          %s234 = smul.addr %s233, 8
          %s235 = scalar_lea.vmem %s2, %s234
          // Predicated region
          $region25: #{tpu_custom_call.1} parent=23 // pred_check
            _
          $region26: #{tpu_custom_call.1} parent=23 // pred_check_branch
            %237 = sbr.rel (0) target = $region28
          $region27: #{tpu_custom_call.1} parent=23 // pred_region
            // Predicated region
            $region29: #{tpu_custom_call.1} parent=27 // pred_check
              _
            $region30: #{tpu_custom_call.1} parent=27 // pred_check_branch
              %239 = sbr.rel (0) target = $region32
            $region31: #{tpu_custom_call.1} parent=27 // pred_region
              // Predicated region
              $region44: #{tpu_custom_call.1} parent=31 // pred_check
                _
              $region45: #{tpu_custom_call.1} parent=31 // pred_check_branch
                %257 = sbr.rel (0) target = $region47
              $region46: #{tpu_custom_call.1} parent=31 // pred_region
                loop: start=0, step=1, limit=1
                $region48: #{tpu_custom_call.1} parent=46 // loop_pre_header
                  _
                $region49: #{tpu_custom_call.1} parent=46 // loop_header
                  %s259 = sphi 0, %s263
                  %p260 = scmp.ge.s32.totalorder %s259, 1
                  %s264 = sphi %s235, %s235
                  %s265 = sphi %s224, %s224
                $region50: #{tpu_custom_call.1} parent=46 // loop_header_branch
                  %262 = sbr.rel (%p260) target = $region54
                $region51: #{tpu_custom_call.1} parent=46 // loop_body
                  %v266 = vld [vmem:[%s264] sm:$0xff]
                  %267 = vst [vmem:[%s265] sm:$0xff] %v266
                  %v268 = vld [vmem:[%s264 + $0x10] sm:$0xff]
                  %269 = vst [vmem:[%s265 + $0x8] sm:$0xff] %v268
                $region52: #{tpu_custom_call.1} parent=46 // loop_footer
                  %s263 = sadd.s32 1, %s259
                $region53: #{tpu_custom_call.1} parent=46 // loop_footer_branch
                  %258 = sbr.rel target = $region49
                $region54: #{tpu_custom_call.1} parent=46 // loop_exit
                  _
              $region47: #{tpu_custom_call.1} parent=31 // pred_fallthru
                _
              // Predicated region
              $region55: #{tpu_custom_call.1} parent=31 // pred_check
                _
              $region56: #{tpu_custom_call.1} parent=31 // pred_check_branch
                %271 = sbr.rel target = $region58
              $region57: #{tpu_custom_call.1} parent=31 // pred_region
                _
              $region58: #{tpu_custom_call.1} parent=31 // pred_fallthru
                _
            $region32: #{tpu_custom_call.1} parent=27 // pred_fallthru
              _
            // Predicated region
            $region33: #{tpu_custom_call.1} parent=27 // pred_check
              _
            $region34: #{tpu_custom_call.1} parent=27 // pred_check_branch
              %241 = sbr.rel target = $region36
            $region35: #{tpu_custom_call.1} parent=27 // pred_region
              %s243 = ssub.s32 256, 1
              loop: start=0, step=1, limit=1
              $region37: #{tpu_custom_call.1} parent=35 // loop_pre_header
                _
              $region38: #{tpu_custom_call.1} parent=35 // loop_header
                %s245 = sphi 0, %s249
                %p246 = scmp.ge.s32.totalorder %s245, 1
                %s250 = sphi %s235, %s235
                %s251 = sphi %s224, %s224
              $region39: #{tpu_custom_call.1} parent=35 // loop_header_branch
                %248 = sbr.rel (%p246) target = $region43
              $region40: #{tpu_custom_call.1} parent=35 // loop_body
                %v252 = vld [vmem:[%s250] sm:%s243]
                %253 = vst [vmem:[%s251] sm:%s243] %v252
                %v254 = vld [vmem:[%s250 + $0x10] sm:%s243]
                %255 = vst [vmem:[%s251 + $0x8] sm:%s243] %v254
              $region41: #{tpu_custom_call.1} parent=35 // loop_footer
                %s249 = sadd.s32 1, %s245
              $region42: #{tpu_custom_call.1} parent=35 // loop_footer_branch
                %244 = sbr.rel target = $region38
              $region43: #{tpu_custom_call.1} parent=35 // loop_exit
                _
            $region36: #{tpu_custom_call.1} parent=27 // pred_fallthru
              _
          $region28: #{tpu_custom_call.1} parent=23 // pred_fallthru
            _
          %272 = vnop
        $region24: #{tpu_custom_call.1} parent=19 // pred_fallthru
          _
        // Predicated region
        $region59: #{tpu_custom_call.1} parent=19 // pred_check
          %p273 = pneg %p117
        $region60: #{tpu_custom_call.1} parent=19 // pred_check_branch
          %275 = sbr.rel (%p273) target = $region62
        $region61: #{tpu_custom_call.1} parent=19 // pred_region
          %s276 = sld [smem:[#allocation4 + %s36]]
          %s277 = sld [smem:[#allocation5 + %s36]]
          %s278 = ssub.s32 %s277, 1
          %p279 = scmp.lt.s32.totalorder %s37, %s278
          %s280 = scalar_select %p279, %s37, %s278
          %s281 = smul.u32 16, %s280
          %p282 = scmp.lt.s32.totalorder %s276, 1
          %s283 = scalar_select %p282, %s276, 1
          %p284 = scmp.lt.s32.totalorder %s281, 31
          %s285 = scalar_select %p284, %s281, 31
          %s286 = smul.addr %s283, 32
          %s287 = sadd.s32 %s285, %s286
          %s288 = smul.addr %s287, 4
          %s289 = scalar_lea.vmem %s3, %s288
          %s290 = sld [smem:[#allocation4 + %s36]]
          %s291 = sld [smem:[#allocation5 + %s36]]
          %s292 = ssub.s32 %s291, 1
          %p293 = scmp.lt.s32.totalorder %s37, %s292
          %s294 = scalar_select %p293, %s37, %s292
          %s295 = smul.u32 16, %s294
        $region62: #{tpu_custom_call.1} parent=19 // pred_fallthru
          _
        // Predicated region
        $region63: #{tpu_custom_call.1} parent=19 // pred_check
          %p296 = pneg %p143
        $region64: #{tpu_custom_call.1} parent=19 // pred_check_branch
          %298 = sbr.rel (%p296) target = $region66
        $region65: #{tpu_custom_call.1} parent=19 // pred_region
          %p299 = scmp.lt.s32.totalorder %s36, 1
          %s300 = scalar_select %p299, %s36, 1
          %s301 = smul.addr %s300, 3
          %s302 = smul.addr %s301, 8
          %s303 = scalar_lea.vmem %s4, %s302
        $region66: #{tpu_custom_call.1} parent=19 // pred_fallthru
          _
      $region20: #{tpu_custom_call.1} parent=5 // pred_fallthru
        _
      %p304 = scmp.le.s32.totalorder 1, %s28
      %p305 = scmp.lt.s32.totalorder %s28, 13
      %p306 = pnand %p304, %p305
      %p307 = pneg %p306
      // Predicated region
      $region67: #{tpu_custom_call.1} parent=5 // pred_check
        _
      $region68: #{tpu_custom_call.1} parent=5 // pred_check_branch
        %309 = sbr.rel (%p306) target = $region70
      $region69: #{tpu_custom_call.1} parent=5 // pred_region
        %s310 = ssub.s32 %s28, 1
        %s311 = sand.u32 %s72, 1
        %s312 = sand.u32 %s72, 1
        %s313 = smul.addr %s312, 16
        %s314 = scalar_lea.vmem [#allocation6], %s313
        // Predicated region
        $region71: #{tpu_custom_call.1} parent=69 // pred_check
          %p315 = pneg %p85
        $region72: #{tpu_custom_call.1} parent=69 // pred_check_branch
          %317 = sbr.rel (%p315) target = $region74
        $region73: #{tpu_custom_call.1} parent=69 // pred_region
          _
        $region74: #{tpu_custom_call.1} parent=69 // pred_fallthru
          _
        %s318 = sand.u32 %s72, 1
        %s319 = sand.u32 %s72, 1
        %s320 = smul.addr %s319, 16
        %s321 = scalar_lea.vmem [#allocation6], %s320
        %p322 = pneg %p85
        %p323 = pneg %p82
        %s324 = sld [smem:[#allocation4 + %s39]]
        %s325 = sld [smem:[#allocation5 + %s39]]
        %s326 = ssub.s32 %s325, 1
        %p327 = scmp.lt.s32.totalorder %s40, %s326
        %s328 = scalar_select %p327, %s40, %s326
        %s329 = smul.u32 16, %s328
        %p330 = scmp.lt.s32.totalorder %s324, 1
        %s331 = scalar_select %p330, %s324, 1
        %p332 = scmp.lt.s32.totalorder %s329, 31
        %s333 = scalar_select %p332, %s329, 31
        %s334 = smul.addr %s331, 32
        %s335 = sadd.s32 %s333, %s334
        %s336 = smul.addr %s335, 4
        %s337 = scalar_lea.vmem %s3, %s336
        %p338 = pneg %p123
        %p339 = pneg %p120
        %p340 = scmp.lt.s32.totalorder %s39, 1
        %s341 = scalar_select %p340, %s39, 1
        %s342 = smul.addr %s341, 3
        %s343 = smul.addr %s342, 8
        %s344 = scalar_lea.vmem %s4, %s343
        %p345 = pneg %p149
        %p346 = pneg %p146
        %p347 = pneg %p170
        %p348 = pneg %p167
        %p349 = pneg %p196
        %p350 = pneg %p193
        %s351 = sand.u32 %s183, 1
        %s352 = scalar_lea.sflag [#allocation8], %s351
        %s353 = sand.u32 %s183, 1
        %s354 = smul.addr %s353, 64
        %s355 = scalar_lea.vmem [#allocation7], %s354
        %s356 = sld [smem:[#allocation5 + %s39]]
        %s357 = ssub.s32 %s356, 1
        %p358 = scmp.lt.s32.totalorder %s40, %s357
        %s359 = scalar_select %p358, %s40, %s357
        %s360 = smul.u32 2, %s38
        %s361 = sld [smem:[#allocation4 + %s39]]
        %s362 = sld [smem:[#allocation5 + %s39]]
        %s363 = ssub.s32 %s362, 1
        %p364 = scmp.lt.s32.totalorder %s40, %s363
        %s365 = scalar_select %p364, %s40, %s363
        %s366 = smul.u32 16, %s365
        %p367 = scmp.lt.s32.totalorder %s361, 1
        %s368 = scalar_select %p367, %s361, 1
        %p369 = scmp.lt.s32.totalorder %s366, 31
        %s370 = scalar_select %p369, %s366, 31
        %s371 = smul.addr %s368, 32
        %s372 = sadd.s32 %s370, %s371
        %s373 = smul.addr %s372, 4
        %s374 = scalar_lea.vmem %s3, %s373
        %s375 = sld [smem:[#allocation4 + %s39]]
        %s376 = sld [smem:[#allocation5 + %s39]]
        %s377 = ssub.s32 %s376, 1
        %p378 = scmp.lt.s32.totalorder %s40, %s377
        %s379 = scalar_select %p378, %s40, %s377
        %s380 = smul.u32 16, %s379
        %p381 = scmp.lt.s32.totalorder %s39, 1
        %s382 = scalar_select %p381, %s39, 1
        %s383 = smul.addr %s382, 3
        %s384 = smul.addr %s383, 8
        %s385 = scalar_lea.vmem %s4, %s384
        %s386 = smul.u32 8, %s38
        %p387 = scmp.eq.s32.totalorder %s39, 0
        %p388 = scmp.eq.s32.totalorder %s40, 0
        %p389 = pnand %p387, %p388
        %p390 = pneg %p389
        // Predicated region
        $region75: #{tpu_custom_call.1} parent=69 // pred_check
          _
        $region76: #{tpu_custom_call.1} parent=69 // pred_check_branch
          %392 = sbr.rel (%p389) target = $region78
        $region77: #{tpu_custom_call.1} parent=69 // pred_region
          %393 = vst [vmem:[%s355] sm:$0xff] 0.0
          %394 = vst [vmem:[%s355 + $0x8] sm:$0xff] 0.0
          %395 = vst [vmem:[%s355 + $0x10] sm:$0xff] 0.0
          %396 = vst [vmem:[%s355 + $0x18] sm:$0xff] 0.0
          %397 = vst [vmem:[%s355 + $0x20] sm:$0xff] 0.0
          %398 = vst [vmem:[%s355 + $0x28] sm:$0xff] 0.0
          %399 = vst [vmem:[%s355 + $0x30] sm:$0xff] 0.0
          %400 = vst [vmem:[%s355 + $0x38] sm:$0xff] 0.0
        $region78: #{tpu_custom_call.1} parent=69 // pred_fallthru
          _
        // Predicated region
        $region79: #{tpu_custom_call.1} parent=69 // pred_check
          %p401 = pneg %p388
        $region80: #{tpu_custom_call.1} parent=69 // pred_check_branch
          %403 = sbr.rel (%p401) target = $region82
        $region81: #{tpu_custom_call.1} parent=69 // pred_region
          %vm404 = vcmask 138240
          %405 = vst.msk [vmem:[#allocation2] sm:$0xff] %vm404, 0.0
          %406 = vst.msk [vmem:[#allocation2 + $0x8] sm:$0xff] %vm404, 0.0
          %407 = vst.msk [vmem:[#allocation2 + $0x10] sm:$0xff] %vm404, 0.0
          %408 = vst.msk [vmem:[#allocation2 + $0x18] sm:$0xff] %vm404, 0.0
          %409 = vst.msk [vmem:[#allocation2 + $0x20] sm:$0xff] %vm404, 0.0
          %410 = vst.msk [vmem:[#allocation2 + $0x28] sm:$0xff] %vm404, 0.0
          %411 = vst.msk [vmem:[#allocation2 + $0x30] sm:$0xff] %vm404, 0.0
          %412 = vst.msk [vmem:[#allocation2 + $0x38] sm:$0xff] %vm404, 0.0
        $region82: #{tpu_custom_call.1} parent=69 // pred_fallthru
          _
        %s413 = sld [smem:[#allocation5 + %s39]]
        %p414 = scmp.lt.s32.totalorder %s40, %s413
        // Predicated region
        $region83: #{tpu_custom_call.1} parent=69 // pred_check
          %p415 = pneg %p414
        $region84: #{tpu_custom_call.1} parent=69 // pred_check_branch
          %417 = sbr.rel (%p415) target = $region86
        $region85: #{tpu_custom_call.1} parent=69 // pred_region
          %v418 = vld [vmem:[%s314] sm:$0xff]
          %v419 = vld [vmem:[%s314 + $0x8] sm:$0xff]
          %v420 = vunpack.c.0.s8 %v418
          %v421 = vunpack.c.1.s8 %v418
          %v422 = vunpack.c.2.s8 %v418
          %v423 = vunpack.c.3.s8 %v418
          %v424 = vunpack.c.0.s8 %v419
          %v425 = vunpack.c.1.s8 %v419
          %v426 = vunpack.c.2.s8 %v419
          %v427 = vunpack.c.3.s8 %v419
          %v428 = vcvt.s32.f32 %v420
          %v429 = vcvt.s32.f32 %v421
          %v430 = vcvt.s32.f32 %v422
          %v431 = vcvt.s32.f32 %v423
          %v432 = vcvt.s32.f32 %v424
          %v433 = vcvt.s32.f32 %v425
          %v434 = vcvt.s32.f32 %v426
          %v435 = vcvt.s32.f32 %v427
          %v436 = vpack.c.bf16 %v429, %v428
          %v437 = vpack.c.bf16 %v431, %v430
          %v438 = vpack.c.bf16 %v433, %v432
          %v439 = vpack.c.bf16 %v435, %v434
          %v440 = vld [vmem:[#allocation2] sm:$0xff]
          %v441 = vld [vmem:[#allocation2 + $0x8] sm:$0xff]
          %v442 = vld [vmem:[#allocation2 + $0x10] sm:$0xff]
          %v443 = vld [vmem:[#allocation2 + $0x18] sm:$0xff]
          %v444 = vld [vmem:[#allocation2 + $0x20] sm:$0xff]
          %v445 = vld [vmem:[#allocation2 + $0x28] sm:$0xff]
          %v446 = vld [vmem:[#allocation2 + $0x30] sm:$0xff]
          %v447 = vld [vmem:[#allocation2 + $0x38] sm:$0xff]
          %v448 = vld [vmem:[%s374] sm:$0xf]
          %v449 = vld [vmem:[%s374 + $0x4] sm:$0xf]
          %v450 = vld [vmem:[%s374 + $0x8] sm:$0xf]
          %v451 = vld [vmem:[%s374 + $0xc] sm:$0xf]
          %v452 = vld [vmem:[%s374 + $0x10] sm:$0xf]
          %v453 = vld [vmem:[%s374 + $0x14] sm:$0xf]
          %v454 = vld [vmem:[%s374 + $0x18] sm:$0xf]
          %v455 = vld [vmem:[%s374 + $0x1c] sm:$0xf]
          %v456 = vld [vmem:[%s374 + $0x20] sm:$0xf]
          %v457 = vld [vmem:[%s374 + $0x24] sm:$0xf]
          %v458 = vld [vmem:[%s374 + $0x28] sm:$0xf]
          %v459 = vld [vmem:[%s374 + $0x2c] sm:$0xf]
          %v460 = vld [vmem:[%s374 + $0x30] sm:$0xf]
          %v461 = vld [vmem:[%s374 + $0x34] sm:$0xf]
          %v462 = vld [vmem:[%s374 + $0x38] sm:$0xf]
          %v463 = vld [vmem:[%s374 + $0x3c] sm:$0xf]
          %v480 = vunpack.c.l.b16 %v448
          %v481 = vunpack.c.l.b16 %v449
          %v482 = vunpack.c.l.b16 %v450
          %v483 = vunpack.c.l.b16 %v451
          %v484 = vunpack.c.l.b16 %v452
          %v485 = vunpack.c.l.b16 %v453
          %v486 = vunpack.c.l.b16 %v454
          %v487 = vunpack.c.l.b16 %v455
          %v488 = vunpack.c.l.b16 %v456
          %v489 = vunpack.c.l.b16 %v457
          %v490 = vunpack.c.l.b16 %v458
          %v491 = vunpack.c.l.b16 %v459
          %v492 = vunpack.c.l.b16 %v460
          %v493 = vunpack.c.l.b16 %v461
          %v494 = vunpack.c.l.b16 %v462
          %v495 = vunpack.c.l.b16 %v463
          %v496 = vpack.c.b16 %v481, %v480
          %v497 = vpack.c.b16 %v483, %v482
          %v498 = vpack.c.b16 %v485, %v484
          %v499 = vpack.c.b16 %v487, %v486
          %v500 = vpack.c.b16 %v489, %v488
          %v501 = vpack.c.b16 %v491, %v490
          %v502 = vpack.c.b16 %v493, %v492
          %v503 = vpack.c.b16 %v495, %v494
          %512 = vmatpush.bf16.msra.mxu0 %v503
          %513 = vmatpush.bf16.msra.mxu0 %v502
          %514 = vmatpush.bf16.msra.mxu0 %v501
          %515 = vmatpush.bf16.msra.mxu0 %v500
          %516 = vmatpush.bf16.msra.mxu0 %v499
          %517 = vmatpush.bf16.msra.mxu0 %v498
          %518 = vmatpush.bf16.msra.mxu0 %v497
          %519 = vmatpush.bf16.msra.mxu0 %v496
          %520 = vmatmul.bf16.gmra.mxu0 %v436
          %v521 = vpop.f32.mrf.mxu0
          %v522 = vadd.f32 0.0, %v521
          %v523 = vpop.f32.mrf.mxu0
          %v524 = vadd.f32 0.0, %v523
          %525 = vmatmul.bf16.gmra.mxu0 %v437
          %v526 = vpop.f32.mrf.mxu0
          %v527 = vadd.f32 0.0, %v526
          %v528 = vpop.f32.mrf.mxu0
          %v529 = vadd.f32 0.0, %v528
          %530 = vmatmul.bf16.gmra.mxu0 %v438
          %v531 = vpop.f32.mrf.mxu0
          %v532 = vadd.f32 0.0, %v531
          %v533 = vpop.f32.mrf.mxu0
          %v534 = vadd.f32 0.0, %v533
          %535 = vmatmul.bf16.gmra.mxu0 %v439
          %v536 = vpop.f32.mrf.mxu0
          %v537 = vadd.f32 0.0, %v536
          %v538 = vpop.f32.mrf.mxu0
          %v539 = vadd.f32 0.0, %v538
          %540 = vdwg.mxu0
          %v541 = vadd.f32 %v440, %v522
          %v542 = vadd.f32 %v441, %v524
          %v543 = vadd.f32 %v442, %v527
          %v544 = vadd.f32 %v443, %v529
          %v545 = vadd.f32 %v444, %v532
          %v546 = vadd.f32 %v445, %v534
          %v547 = vadd.f32 %v446, %v537
          %v548 = vadd.f32 %v447, %v539
          %vm549 = vcmask 138240
          %550 = vst.msk [vmem:[#allocation2] sm:$0xff] %vm549, %v541
          %551 = vst.msk [vmem:[#allocation2 + $0x8] sm:$0xff] %vm549, %v542
          %552 = vst.msk [vmem:[#allocation2 + $0x10] sm:$0xff] %vm549, %v543
          %553 = vst.msk [vmem:[#allocation2 + $0x18] sm:$0xff] %vm549, %v544
          %554 = vst.msk [vmem:[#allocation2 + $0x20] sm:$0xff] %vm549, %v545
          %555 = vst.msk [vmem:[#allocation2 + $0x28] sm:$0xff] %vm549, %v546
          %556 = vst.msk [vmem:[#allocation2 + $0x30] sm:$0xff] %vm549, %v547
          %557 = vst.msk [vmem:[#allocation2 + $0x38] sm:$0xff] %vm549, %v548
        $region86: #{tpu_custom_call.1} parent=69 // pred_fallthru
          _
        %p558 = scmp.eq.s32.totalorder %s40, 1
        // Predicated region
        $region87: #{tpu_custom_call.1} parent=69 // pred_check
          %p559 = pneg %p558
        $region88: #{tpu_custom_call.1} parent=69 // pred_check_branch
          %561 = sbr.rel (%p559) target = $region90
        $region89: #{tpu_custom_call.1} parent=69 // pred_region
          %v562 = vld [vmem:[#allocation2] sm:$0xff]
          %v563 = vld [vmem:[#allocation2 + $0x8] sm:$0xff]
          %v564 = vld [vmem:[#allocation2 + $0x10] sm:$0xff]
          %v565 = vld [vmem:[#allocation2 + $0x18] sm:$0xff]
          %v566 = vld [vmem:[#allocation2 + $0x20] sm:$0xff]
          %v567 = vld [vmem:[#allocation2 + $0x28] sm:$0xff]
          %v568 = vld [vmem:[#allocation2 + $0x30] sm:$0xff]
          %v569 = vld [vmem:[#allocation2 + $0x38] sm:$0xff]
          %v570 = vld [vmem:[%s385] sm:$0xff]
          %v571 = vld [vmem:[%s385 + $0x8] sm:$0xff]
          %v572 = vld [vmem:[%s385 + $0x10] sm:$0x1]
          %vm573 = vcmask 138240
          %v575 = vsel %vm573, %v562, 0
          %v578 = vsel %vm573, %v563, 0
          %v581 = vsel %vm573, %v564, 0
          %v584 = vsel %vm573, %v565, 0
          %v587 = vsel %vm573, %v566, 0
          %v590 = vsel %vm573, %v567, 0
          %v593 = vsel %vm573, %v568, 0
          %v596 = vsel %vm573, %v569, 0
          %vm598 = vcmask 1040384
          %v600 = vsel %vm598, %v572, 0
          %602 = vmatpush.msra.mxu0 0.0
          %603 = vmatpush.msra.mxu0 0.0
          %604 = vmatpush.msra.mxu0 0.0
          %605 = vmatpush.msra.mxu0 0.0
          %606 = vmatpush.msra.mxu0 0.0
          %607 = vmatpush.msra.mxu0 0.0
          %608 = vmatpush.msra.mxu0 0.0
          %609 = vmatpush.msra.mxu0 0.0
          %610 = vmatpush.msra.mxu0 0.0
          %611 = vmatpush.msra.mxu0 0.0
          %612 = vmatpush.msra.mxu0 0.0
          %613 = vmatpush.msra.mxu0 0.0
          %614 = vmatpush.msra.mxu0 0.0
          %615 = vmatpush.msra.mxu0 %v600
          %616 = vmatpush.msra.mxu0 %v571
          %617 = vmatpush.msra.mxu0 %v570
          %618 = vmatmul.f32.gmra.mxu0 %v575
          %v619 = vpop.f32.mrf.mxu0
          %v620 = vadd.f32 0.0, %v619
          %621 = vmatmul.f32.gmra.mxu0 %v578
          %v622 = vpop.f32.mrf.mxu0
          %v623 = vadd.f32 0.0, %v622
          %624 = vmatmul.f32.gmra.mxu0 %v581
          %v625 = vpop.f32.mrf.mxu0
          %v626 = vadd.f32 0.0, %v625
          %627 = vmatmul.f32.gmra.mxu0 %v584
          %v628 = vpop.f32.mrf.mxu0
          %v629 = vadd.f32 0.0, %v628
          %630 = vmatmul.f32.gmra.mxu0 %v587
          %v631 = vpop.f32.mrf.mxu0
          %v632 = vadd.f32 0.0, %v631
          %633 = vmatmul.f32.gmra.mxu0 %v590
          %v634 = vpop.f32.mrf.mxu0
          %v635 = vadd.f32 0.0, %v634
          %636 = vmatmul.f32.gmra.mxu0 %v593
          %v637 = vpop.f32.mrf.mxu0
          %v638 = vadd.f32 0.0, %v637
          %639 = vmatmul.f32.gmra.mxu0 %v596
          %v640 = vpop.f32.mrf.mxu0
          %v641 = vadd.f32 0.0, %v640
          %642 = vdwg.mxu0
          %v643 = vmax.f32 %v562, 1.0
          %v644 = vmax.f32 %v563, 1.0
          %v645 = vmax.f32 %v564, 1.0
          %v646 = vmax.f32 %v565, 1.0
          %v647 = vmax.f32 %v566, 1.0
          %v648 = vmax.f32 %v567, 1.0
          %v649 = vmax.f32 %v568, 1.0
          %v650 = vmax.f32 %v569, 1.0
          %v651 = vrcp.pop %v643
          %v652 = vmul.f32 %v643, %v651
          %v653 = vsub.f32 1.0, %v652
          %v654 = vmul.f32 %v651, %v653
          %v655 = vadd.f32 %v651, %v654
          %vm656 = vweird.f32 %v643
          %vm657 = vweird.f32 %v651
          %vm658 = vmor %vm656, %vm657
          %v659 = vsel %vm658, %v651, %v655
          %v660 = vand.u32 2147483647, %v643
          %vm661 = vcmp.eq.f32.partialorder %v660, 8.507059e+37
          %v662 = vand.u32 %v643, 2147483648
          %v663 = vor.u32 1.1754944e-38, %v662
          %v664 = vsel %vm661, %v663, %v659
          %v665 = vmul.f32 1.0, %v664
          %v666 = vrcp.pop %v644
          %v667 = vmul.f32 %v644, %v666
          %v668 = vsub.f32 1.0, %v667
          %v669 = vmul.f32 %v666, %v668
          %v670 = vadd.f32 %v666, %v669
          %vm671 = vweird.f32 %v644
          %vm672 = vweird.f32 %v666
          %vm673 = vmor %vm671, %vm672
          %v674 = vsel %vm673, %v666, %v670
          %v675 = vand.u32 2147483647, %v644
          %vm676 = vcmp.eq.f32.partialorder %v675, 8.507059e+37
          %v677 = vand.u32 %v644, 2147483648
          %v678 = vor.u32 1.1754944e-38, %v677
          %v679 = vsel %vm676, %v678, %v674
          %v680 = vmul.f32 1.0, %v679
          %v681 = vrcp.pop %v645
          %v682 = vmul.f32 %v645, %v681
          %v683 = vsub.f32 1.0, %v682
          %v684 = vmul.f32 %v681, %v683
          %v685 = vadd.f32 %v681, %v684
          %vm686 = vweird.f32 %v645
          %vm687 = vweird.f32 %v681
          %vm688 = vmor %vm686, %vm687
          %v689 = vsel %vm688, %v681, %v685
          %v690 = vand.u32 2147483647, %v645
          %vm691 = vcmp.eq.f32.partialorder %v690, 8.507059e+37
          %v692 = vand.u32 %v645, 2147483648
          %v693 = vor.u32 1.1754944e-38, %v692
          %v694 = vsel %vm691, %v693, %v689
          %v695 = vmul.f32 1.0, %v694
          %v696 = vrcp.pop %v646
          %v697 = vmul.f32 %v646, %v696
          %v698 = vsub.f32 1.0, %v697
          %v699 = vmul.f32 %v696, %v698
          %v700 = vadd.f32 %v696, %v699
          %vm701 = vweird.f32 %v646
          %vm702 = vweird.f32 %v696
          %vm703 = vmor %vm701, %vm702
          %v704 = vsel %vm703, %v696, %v700
          %v705 = vand.u32 2147483647, %v646
          %vm706 = vcmp.eq.f32.partialorder %v705, 8.507059e+37
          %v707 = vand.u32 %v646, 2147483648
          %v708 = vor.u32 1.1754944e-38, %v707
          %v709 = vsel %vm706, %v708, %v704
          %v710 = vmul.f32 1.0, %v709
          %v711 = vrcp.pop %v647
          %v712 = vmul.f32 %v647, %v711
          %v713 = vsub.f32 1.0, %v712
          %v714 = vmul.f32 %v711, %v713
          %v715 = vadd.f32 %v711, %v714
          %vm716 = vweird.f32 %v647
          %vm717 = vweird.f32 %v711
          %vm718 = vmor %vm716, %vm717
          %v719 = vsel %vm718, %v711, %v715
          %v720 = vand.u32 2147483647, %v647
          %vm721 = vcmp.eq.f32.partialorder %v720, 8.507059e+37
          %v722 = vand.u32 %v647, 2147483648
          %v723 = vor.u32 1.1754944e-38, %v722
          %v724 = vsel %vm721, %v723, %v719
          %v725 = vmul.f32 1.0, %v724
          %v726 = vrcp.pop %v648
          %v727 = vmul.f32 %v648, %v726
          %v728 = vsub.f32 1.0, %v727
          %v729 = vmul.f32 %v726, %v728
          %v730 = vadd.f32 %v726, %v729
          %vm731 = vweird.f32 %v648
          %vm732 = vweird.f32 %v726
          %vm733 = vmor %vm731, %vm732
          %v734 = vsel %vm733, %v726, %v730
          %v735 = vand.u32 2147483647, %v648
          %vm736 = vcmp.eq.f32.partialorder %v735, 8.507059e+37
          %v737 = vand.u32 %v648, 2147483648
          %v738 = vor.u32 1.1754944e-38, %v737
          %v739 = vsel %vm736, %v738, %v734
          %v740 = vmul.f32 1.0, %v739
          %v741 = vrcp.pop %v649
          %v742 = vmul.f32 %v649, %v741
          %v743 = vsub.f32 1.0, %v742
          %v744 = vmul.f32 %v741, %v743
          %v745 = vadd.f32 %v741, %v744
          %vm746 = vweird.f32 %v649
          %vm747 = vweird.f32 %v741
          %vm748 = vmor %vm746, %vm747
          %v749 = vsel %vm748, %v741, %v745
          %v750 = vand.u32 2147483647, %v649
          %vm751 = vcmp.eq.f32.partialorder %v750, 8.507059e+37
          %v752 = vand.u32 %v649, 2147483648
          %v753 = vor.u32 1.1754944e-38, %v752
          %v754 = vsel %vm751, %v753, %v749
          %v755 = vmul.f32 1.0, %v754
          %v756 = vrcp.pop %v650
          %v757 = vmul.f32 %v650, %v756
          %v758 = vsub.f32 1.0, %v757
          %v759 = vmul.f32 %v756, %v758
          %v760 = vadd.f32 %v756, %v759
          %vm761 = vweird.f32 %v650
          %vm762 = vweird.f32 %v756
          %vm763 = vmor %vm761, %vm762
          %v764 = vsel %vm763, %v756, %v760
          %v765 = vand.u32 2147483647, %v650
          %vm766 = vcmp.eq.f32.partialorder %v765, 8.507059e+37
          %v767 = vand.u32 %v650, 2147483648
          %v768 = vor.u32 1.1754944e-38, %v767
          %v769 = vsel %vm766, %v768, %v764
          %v770 = vmul.f32 1.0, %v769
          %v771 = vld [vmem:[%s355] sm:$0xff]
          %v772 = vld [vmem:[%s355 + $0x8] sm:$0xff]
          %v773 = vld [vmem:[%s355 + $0x10] sm:$0xff]
          %v774 = vld [vmem:[%s355 + $0x18] sm:$0xff]
          %v775 = vld [vmem:[%s355 + $0x20] sm:$0xff]
          %v776 = vld [vmem:[%s355 + $0x28] sm:$0xff]
          %v777 = vld [vmem:[%s355 + $0x30] sm:$0xff]
          %v778 = vld [vmem:[%s355 + $0x38] sm:$0xff]
          %780 = vset.pattern.permute.xlu0 16
          %781 = vperm.xlu0 %780, %v665
          %v782 = vpop.permute.xlu0 %781
          %785 = vset.pattern.permute.xlu0 16
          %786 = vperm.xlu0 %785, %v680
          %v787 = vpop.permute.xlu0 %786
          %790 = vset.pattern.permute.xlu0 16
          %791 = vperm.xlu0 %790, %v695
          %v792 = vpop.permute.xlu0 %791
          %795 = vset.pattern.permute.xlu0 16
          %796 = vperm.xlu0 %795, %v710
          %v797 = vpop.permute.xlu0 %796
          %800 = vset.pattern.permute.xlu0 16
          %801 = vperm.xlu0 %800, %v725
          %v802 = vpop.permute.xlu0 %801
          %805 = vset.pattern.permute.xlu0 16
          %806 = vperm.xlu0 %805, %v740
          %v807 = vpop.permute.xlu0 %806
          %810 = vset.pattern.permute.xlu0 16
          %811 = vperm.xlu0 %810, %v755
          %v812 = vpop.permute.xlu0 %811
          %815 = vset.pattern.permute.xlu0 16
          %816 = vperm.xlu0 %815, %v770
          %v817 = vpop.permute.xlu0 %816
          %v819 = vmul.f32 %v620, %v782
          %v820 = vmul.f32 %v623, %v787
          %v821 = vmul.f32 %v626, %v792
          %v822 = vmul.f32 %v629, %v797
          %v823 = vmul.f32 %v632, %v802
          %v824 = vmul.f32 %v635, %v807
          %v825 = vmul.f32 %v638, %v812
          %v826 = vmul.f32 %v641, %v817
          %v827 = vadd.f32 %v771, %v819
          %v828 = vadd.f32 %v772, %v820
          %v829 = vadd.f32 %v773, %v821
          %v830 = vadd.f32 %v774, %v822
          %v831 = vadd.f32 %v775, %v823
          %v832 = vadd.f32 %v776, %v824
          %v833 = vadd.f32 %v777, %v825
          %v834 = vadd.f32 %v778, %v826
          %835 = vst [vmem:[%s355] sm:$0xff] %v827
          %836 = vst [vmem:[%s355 + $0x8] sm:$0xff] %v828
          %837 = vst [vmem:[%s355 + $0x10] sm:$0xff] %v829
          %838 = vst [vmem:[%s355 + $0x18] sm:$0xff] %v830
          %839 = vst [vmem:[%s355 + $0x20] sm:$0xff] %v831
          %840 = vst [vmem:[%s355 + $0x28] sm:$0xff] %v832
          %841 = vst [vmem:[%s355 + $0x30] sm:$0xff] %v833
          %842 = vst [vmem:[%s355 + $0x38] sm:$0xff] %v834
        $region90: #{tpu_custom_call.1} parent=69 // pred_fallthru
          _
        %p843 = scmp.eq.s32.totalorder %s39, 1
        %p844 = pnand %p843, %p558
        %p845 = pneg %p844
        // Predicated region
        $region91: #{tpu_custom_call.1} parent=69 // pred_check
          _
        $region92: #{tpu_custom_call.1} parent=69 // pred_check_branch
          %847 = sbr.rel (%p844) target = $region94
        $region93: #{tpu_custom_call.1} parent=69 // pred_region
          %v848 = vld [vmem:[%s355] sm:$0xff]
          %v849 = vld [vmem:[%s355 + $0x8] sm:$0xff]
          %v850 = vld [vmem:[%s355 + $0x10] sm:$0xff]
          %v851 = vld [vmem:[%s355 + $0x18] sm:$0xff]
          %v852 = vld [vmem:[%s355 + $0x20] sm:$0xff]
          %v853 = vld [vmem:[%s355 + $0x28] sm:$0xff]
          %v854 = vld [vmem:[%s355 + $0x30] sm:$0xff]
          %v855 = vld [vmem:[%s355 + $0x38] sm:$0xff]
          %v856 = vld [vmem:[%s5] sm:$0x1]
          %v858 = vperm.slane %v856, 0
          %v860 = vadd.f32 %v848, %v858
          %v861 = vadd.f32 %v849, %v858
          %v862 = vadd.f32 %v850, %v858
          %v863 = vadd.f32 %v851, %v858
          %v864 = vadd.f32 %v852, %v858
          %v865 = vadd.f32 %v853, %v858
          %v866 = vadd.f32 %v854, %v858
          %v867 = vadd.f32 %v855, %v858
          %v868 = vmax.f32 %v860, 0.0
          %v869 = vmax.f32 %v861, 0.0
          %v870 = vmax.f32 %v862, 0.0
          %v871 = vmax.f32 %v863, 0.0
          %v872 = vmax.f32 %v864, 0.0
          %v873 = vmax.f32 %v865, 0.0
          %v874 = vmax.f32 %v866, 0.0
          %v875 = vmax.f32 %v867, 0.0
          %876 = vst [vmem:[%s355] sm:$0xff] %v868
          %877 = vst [vmem:[%s355 + $0x8] sm:$0xff] %v869
          %878 = vst [vmem:[%s355 + $0x10] sm:$0xff] %v870
          %879 = vst [vmem:[%s355 + $0x18] sm:$0xff] %v871
          %880 = vst [vmem:[%s355 + $0x20] sm:$0xff] %v872
          %881 = vst [vmem:[%s355 + $0x28] sm:$0xff] %v873
          %882 = vst [vmem:[%s355 + $0x30] sm:$0xff] %v874
          %883 = vst [vmem:[%s355 + $0x38] sm:$0xff] %v875
        $region94: #{tpu_custom_call.1} parent=69 // pred_fallthru
          _
        %s884 = sand.u32 %s183, 1
        %s885 = scalar_lea.sflag [#allocation8], %s884
        %s886 = sand.u32 %s183, 1
        %s887 = smul.addr %s886, 64
        %s888 = scalar_lea.vmem [#allocation7], %s887
        // Predicated region
        $region95: #{tpu_custom_call.1} parent=69 // pred_check
          %p889 = pneg %p193
        $region96: #{tpu_custom_call.1} parent=69 // pred_check_branch
          %891 = sbr.rel (%p889) target = $region98
        $region97: #{tpu_custom_call.1} parent=69 // pred_region
          %s892 = smul.u32 8, %s38
          %894 = vsyncadd %s885, 0
          %s895 = smul.addr %s892, 8
          %s896 = scalar_lea.hbm %s6, %s895
          %s897 = sshll.u32 %s888, 4
          %s898 = int_to_ptr.vmem [resolvable:$true] %s897
          %s899 = sshll.u32 %s896, 4
          %s900 = int_to_ptr.hbm [resolvable:$true] %s899
          %905 = dma.vmem_to_hbm [thread:$0]  %s898, 1024, %s900, %s885, 128, 128, 8
        $region98: #{tpu_custom_call.1} parent=69 // pred_fallthru
          _
      $region70: #{tpu_custom_call.1} parent=5 // pred_fallthru
        _
      %p906 = scmp.le.s32.totalorder 2, %s28
      // Predicated region
      $region99: #{tpu_custom_call.1} parent=5 // pred_check
        %p907 = pneg %p906
      $region100: #{tpu_custom_call.1} parent=5 // pred_check_branch
        %909 = sbr.rel (%p907) target = $region102
      $region101: #{tpu_custom_call.1} parent=5 // pred_region
        %s910 = ssub.s32 %s28, 2
        // Predicated region
        $region103: #{tpu_custom_call.1} parent=101 // pred_check
          %p911 = pneg %p199
        $region104: #{tpu_custom_call.1} parent=101 // pred_check_branch
          %913 = sbr.rel (%p911) target = $region106
        $region105: #{tpu_custom_call.1} parent=101 // pred_region
          %s914 = sand.u32 %s184, 1
          %s915 = scalar_lea.sflag [#allocation8], %s914
          %s916 = sand.u32 %s184, 1
          %s917 = smul.addr %s916, 64
          %s918 = scalar_lea.vmem [#allocation7], %s917
          %920 = dma.done %s915, 1024
        $region106: #{tpu_custom_call.1} parent=101 // pred_fallthru
          _
      $region102: #{tpu_custom_call.1} parent=5 // pred_fallthru
        _
    $region6: #{tpu_custom_call.1} parent=1 // loop_footer
      %s32 = sadd.s32 1, %s28
    $region7: #{tpu_custom_call.1} parent=1 // loop_footer_branch
      %27 = sbr.rel target = $region3
    $region8: #{tpu_custom_call.1} parent=1 // loop_exit
      _
    %921 = vsyncpa [#allocation8], 1
    %s922 = scalar_lea.sflag [#allocation8], 1
    %923 = vsyncpa %s922, 1

</llo_original>
